<compile_context>
chip_gen: v7x
topology: tpu7x:2x2x1
jax: 0.10.0
libtpu: 0.0.40
codegen_flags: <defaults>
</compile_context>

<pallas_src>
import functools

import jax
import jax.numpy as jnp
from jax.experimental import pallas as pl
from jax.experimental.pallas import tpu as pltpu


_TILE_BYTES_TARGET = 2 << 20    # per-input VMEM tile target (2 MiB)
_SAFE_VMEM_TOTAL = 40 << 20     # budget for all double-buffered tiles
_VMEM_SLACK = 2 << 20           # headroom added to the explicit limit
_VMEM_LIMIT_FLOOR = 16 << 20    # never request less than the v5e default
_VMEM_LIMIT_CAP = 48 << 20      # stays inside v7x's 64 MiB physical VMEM
_TINY_BYPASS_BYTES = 256 << 10  # below this total footprint use plain jnp


def _sublane(dtype):
    """Packed-sublane tile for a dtype (8 for 4B, 16 for 2B, 32 for 1B)."""
    itemsize = jnp.dtype(dtype).itemsize
    if itemsize >= 4:
        return 8
    if itemsize == 2:
        return 16
    return 32


def _acc_dtype(dtype):
    """Accumulator dtype: f32 for floats, int32 for integer/bool inputs."""
    if jnp.issubdtype(dtype, jnp.floating):
        return jnp.float32
    return jnp.int32


def _add_kernel(*refs, acc_dtype):
    """Unrolled elementwise sum of n input tiles into one output tile.

    refs = (x0_ref, ..., x_{n-1}_ref, o_ref), each a (TR, LW) VMEM tile.
    """
    *x_refs, o_ref = refs
    acc = x_refs[0][...].astype(acc_dtype)
    for x_ref in x_refs[1:]:
        acc = acc + x_ref[...].astype(acc_dtype)
    o_ref[...] = acc.astype(o_ref.dtype)


def _pallas_add_2d(xs_2d):
    """xs_2d: list of n identically-shaped (R, LW) arrays -> (R, LW) sum."""
    n = len(xs_2d)
    R, LW = xs_2d[0].shape
    dtype = xs_2d[0].dtype
    itemsize = jnp.dtype(dtype).itemsize
    sub = _sublane(dtype)

    # n-aware per-input tile byte budget (keeps 2*(n+1) buffers inside VMEM).
    tile_bytes = min(_TILE_BYTES_TARGET, _SAFE_VMEM_TOTAL // (2 * (n + 1)))
    tile_bytes = max(tile_bytes, sub * LW * itemsize)

    # Row-tile: multiple of the packed sublane count.
    tr_target = max(sub, (tile_bytes // (LW * itemsize)) // sub * sub)
    if R <= tr_target:
        if R <= sub:
            tr = R  # full extent on this axis (always legal)
        else:
            # Small slab: still split into >= 2 grid steps so both v7x
            # TensorCores get work under dimension_semantics=("parallel",).
            tr = min(R, pl.cdiv(pl.cdiv(R, 2), sub) * sub)
    else:
        tr = tr_target

    grid = (pl.cdiv(R, tr),)
    spec = pl.BlockSpec((tr, LW), lambda r: (r, 0))

    # Explicit scoped-VMEM budget: (n inputs + 1 output) x double buffering.
    tile_actual = tr * LW * itemsize
    vmem_need = 2 * (n + 1) * tile_actual + _VMEM_SLACK
    vmem_limit = min(max(vmem_need, _VMEM_LIMIT_FLOOR), _VMEM_LIMIT_CAP)

    kernel = functools.partial(_add_kernel, acc_dtype=_acc_dtype(dtype))
    return pl.pallas_call(
        kernel,
        out_shape=jax.ShapeDtypeStruct((R, LW), dtype),
        grid=grid,
        in_specs=[spec] * n,
        out_specs=spec,
        compiler_params=pltpu.CompilerParams(
            dimension_semantics=("parallel",),  # shard rows across TCs
            vmem_limit_bytes=vmem_limit),
    )(*xs_2d)


class AddPallas:
    """JAX/Pallas equivalent of the PyTorch `Add` module: y = sum_i x[i]."""

    def __init__(self, n, tiny_bypass_bytes=_TINY_BYPASS_BYTES):
        self.n = n
        self.tiny_bypass_bytes = tiny_bypass_bytes

    def __call__(self, xs):
        assert len(xs) == self.n
        shape = xs[0].shape
        dtype = xs[0].dtype
        for x in xs:
            assert x.shape == shape and x.dtype == dtype, (
                "all inputs to Add must share shape and dtype")

        total = 1
        for d in shape:
            total *= d
        itemsize = jnp.dtype(dtype).itemsize

        # Tiny tensors: pallas_call launch cost dominates; XLA's fused add wins.
        if total * (self.n + 1) * itemsize < self.tiny_bypass_bytes:
            return self._jnp_sum(xs)

        # Widest lane-dense last dim that divides the element count.
        lw = None
        for cand in (1024, 512, 256, 128):
            if total % cand == 0:
                lw = cand
                break

        if lw is not None:
            xs_2d = [x.reshape(total // lw, lw) for x in xs]
            return _pallas_add_2d(xs_2d).reshape(shape)

        # Non-128-divisible element count: bulk (Pallas, lane-dense) + tail
        # (< 128 elements, plain jnp).  No padded copies of the inputs and no
        # extra full pass over the output.
        bulk = (total // 128) * 128
        if bulk == 0:
            return self._jnp_sum(xs)
        flat = [x.reshape(-1) for x in xs]
        heads = [f[:bulk].reshape(bulk // 128, 128) for f in flat]
        tails = [f[bulk:] for f in flat]
        y_head = _pallas_add_2d(heads).reshape(-1)
        y_tail = self._jnp_sum(tails)
        return jnp.concatenate([y_head, y_tail]).reshape(shape)

    @staticmethod
    def _jnp_sum(xs):
        y = xs[0]
        for x in xs[1:]:
            y = y + x
        return y


if __name__ == "__main__":
    key = jax.random.PRNGKey(0)
    n = 3
    B, C, H, W = 2, 4, 16, 16
    keys = jax.random.split(key, n)
    xs = [jax.random.normal(k, (B, C, H, W), dtype=jnp.float32) for k in keys]

    def ref_sum(ts):
        y = ts[0]
        for t in ts[1:]:
            y = y + t
        return y

    # 1) Pallas path (force past the tiny-input bypass so the kernel itself
    #    runs even at this small demo shape).
    mod = AddPallas(n, tiny_bypass_bytes=0)
    y = jax.block_until_ready(mod(xs))
    assert y.shape == (B, C, H, W)
    assert y.dtype == xs[0].dtype
    assert jnp.allclose(y, ref_sum(xs), atol=1e-5, rtol=1e-5)

    # 2) Default dispatch (tiny tensors take the plain-jnp fast path).
    y_def = jax.block_until_ready(AddPallas(n)(xs))
    assert jnp.allclose(y_def, ref_sum(xs), atol=1e-5, rtol=1e-5)

    # 3) Non-128-divisible element count -> bulk(Pallas) + tail(jnp) split.
    xs_odd = [jax.random.normal(k, (5, 27), dtype=jnp.float32)  # 135 elements
              for k in jax.random.split(jax.random.PRNGKey(1), n)]
    y_odd = jax.block_until_ready(AddPallas(n, tiny_bypass_bytes=0)(xs_odd))
    assert jnp.allclose(y_odd, ref_sum(xs_odd), atol=1e-5, rtol=1e-5)

    # 4) Integer dtype (accumulates in int32; matches PyTorch integer add).
    xs_int = [jax.random.randint(k, (4, 256), -1000, 1000, dtype=jnp.int32)
              for k in jax.random.split(jax.random.PRNGKey(2), n)]
    y_int = jax.block_until_ready(AddPallas(n, tiny_bypass_bytes=0)(xs_int))
    assert y_int.dtype == jnp.int32
    assert bool((y_int == ref_sum(xs_int)).all())

    print("KERNEL_OK")
</pallas_src>

<mosaic_0001>
module attributes {stable_mosaic.version = 11 : i64} {
  func.func @_add_kernel(%arg0: i32, %arg1: memref<2x1024xf32, #tpu.memory_space<vmem>>, %arg2: memref<2x1024xf32, #tpu.memory_space<vmem>>, %arg3: memref<2x1024xf32, #tpu.memory_space<vmem>>, %arg4: memref<2x1024xf32, #tpu.memory_space<vmem>>) attributes {dimension_semantics = [#tpu.dimension_semantics<parallel>], iteration_bounds = array<i64: 1>, scalar_prefetch = 0 : i64, scratch_operands = 0 : i64, tpu.core_type = #tpu.core_type<tc>, window_params = [{transform_indices = @transform_0, window_bounds = array<i64: 2, 1024>}, {transform_indices = @transform_1, window_bounds = array<i64: 2, 1024>}, {transform_indices = @transform_2, window_bounds = array<i64: 2, 1024>}, {transform_indices = @transform_3, window_bounds = array<i64: 2, 1024>}]} {
    %c0 = arith.constant 0 : index
    %c0_0 = arith.constant 0 : index
    %0 = vector.load %arg1[%c0, %c0_0] : memref<2x1024xf32, #tpu.memory_space<vmem>>, vector<2x1024xf32>
    %c0_1 = arith.constant 0 : index
    %c0_2 = arith.constant 0 : index
    %1 = vector.load %arg2[%c0_1, %c0_2] : memref<2x1024xf32, #tpu.memory_space<vmem>>, vector<2x1024xf32>
    %2 = arith.addf %0, %1 : vector<2x1024xf32>
    %c0_3 = arith.constant 0 : index
    %c0_4 = arith.constant 0 : index
    %3 = vector.load %arg3[%c0_3, %c0_4] : memref<2x1024xf32, #tpu.memory_space<vmem>>, vector<2x1024xf32>
    %4 = arith.addf %2, %3 : vector<2x1024xf32>
    %c0_5 = arith.constant 0 : index
    %c0_6 = arith.constant 0 : index
    %5 = vector.load %arg4[%c0_5, %c0_6] : memref<2x1024xf32, #tpu.memory_space<vmem>>, vector<2x1024xf32>
    tpu.vector_store %arg4[%c0_5, %c0_6], %4 {strides = array<i32>} : memref<2x1024xf32, #tpu.memory_space<vmem>>, vector<2x1024xf32>,
    return
  }
  func.func @transform_0(%arg0: i32) -> (i32, i32) {
    %c0_i32 = arith.constant 0 : i32
    %c0_i32_0 = arith.constant 0 : i32
    return %arg0, %c0_i32 : i32, i32
  }
  func.func @transform_1(%arg0: i32) -> (i32, i32) {
    %c0_i32 = arith.constant 0 : i32
    %c0_i32_0 = arith.constant 0 : i32
    return %arg0, %c0_i32 : i32, i32
  }
  func.func @transform_2(%arg0: i32) -> (i32, i32) {
    %c0_i32 = arith.constant 0 : i32
    %c0_i32_0 = arith.constant 0 : i32
    return %arg0, %c0_i32 : i32, i32
  }
  func.func @transform_3(%arg0: i32) -> (i32, i32) {
    %c0_i32 = arith.constant 0 : i32
    %c0_i32_0 = arith.constant 0 : i32
    return %arg0, %c0_i32 : i32, i32
  }
}

</mosaic_0001>

<llo_original>
// kernel: tpu_custom_call.1
$region0: #{tpu_custom_call.1}
  #allocation0 [shape = 'u32[]', space=smem, size = 0x4, offset = 0x4, fixed_abs, tag = 'smem constant byte address 0x4 - core index']
  #allocation1 [shape = 'u32[144,128]{1,0:T(1,128)}', space=vmem, size = 0x12000, scoped, tag = 'internal scratch']
  %s0 = inlined_call_operand.hbm [shape: f32[2,1024], index: 0, kind: input, shape index: {}]
  %s1 = inlined_call_operand.hbm [shape: f32[2,1024], index: 1, kind: input, shape index: {}]
  %s2 = inlined_call_operand.hbm [shape: f32[2,1024], index: 2, kind: input, shape index: {}]
  %s3 = inlined_call_operand.hbm [shape: f32[2,1024], index: 3, kind: output, shape index: {}]
  %s4 = sld [smem:[#allocation0]]
  $region34: #{tpu_custom_call.1} parent=0
    _
  %s6 = ssub.s32 1, %s4
  %s7 = scalar_select 0, %s6, %s4
  $region1: #{tpu_custom_call.1} parent=0
    #allocation2 [shape = 'u8[8192]{0}', space=vmem, size = 0x2000, scoped, tag = 'input window, operand 0, single buffered']
    #allocation3 [shape = 's32[1]{0}', space=sflag, size = 0x4, scoped, tag = 'scoped memory for tpu_custom_call.1']
    #allocation4 [shape = 's32[1]{0}', space=sflag, size = 0x4, scoped, tag = 'scoped memory for tpu_custom_call.1']
    #allocation5 [shape = 'u8[8192]{0}', space=vmem, size = 0x2000, scoped, tag = 'input window, operand 1, single buffered']
    #allocation6 [shape = 's32[1]{0}', space=sflag, size = 0x4, scoped, tag = 'scoped memory for tpu_custom_call.1']
    #allocation7 [shape = 'u8[8192]{0}', space=vmem, size = 0x2000, scoped, tag = 'input window, operand 2, single buffered']
    #allocation8 [shape = 'u8[8192]{0}', space=vmem, size = 0x2000, scoped, tag = 'output window, operand 0, single buffered']
    %8 = vsyncpa [#allocation3], 0
    %9 = vsyncpa [#allocation6], 0
    %10 = vsyncpa [#allocation4], 0
    // Predicated region
    $region2: #{tpu_custom_call.1} parent=1 // pred_check
      _
    $region3: #{tpu_custom_call.1} parent=1 // pred_check_branch
      %12 = sbr.rel (0) target = $region5
    $region4: #{tpu_custom_call.1} parent=1 // pred_region
      %s14 = ssub.s32 256, 256
      %15 = vsyncadd [#allocation3], %s14
      %s17 = sshll.u32 [#allocation2], 4
      %s18 = int_to_ptr.vmem [resolvable:$true] %s17
      %20 = dma.hbm_to_vmem [thread:$0]  %s0, 256, %s18, [#allocation3]
    $region5: #{tpu_custom_call.1} parent=1 // pred_fallthru
      _
    // Predicated region
    $region6: #{tpu_custom_call.1} parent=1 // pred_check
      _
    $region7: #{tpu_custom_call.1} parent=1 // pred_check_branch
      %22 = sbr.rel (0) target = $region9
    $region8: #{tpu_custom_call.1} parent=1 // pred_region
      %s24 = ssub.s32 256, 256
      %25 = vsyncadd [#allocation6], %s24
      %s27 = sshll.u32 [#allocation5], 4
      %s28 = int_to_ptr.vmem [resolvable:$true] %s27
      %30 = dma.hbm_to_vmem [thread:$0]  %s1, 256, %s28, [#allocation6]
    $region9: #{tpu_custom_call.1} parent=1 // pred_fallthru
      _
    // Predicated region
    $region10: #{tpu_custom_call.1} parent=1 // pred_check
      _
    $region11: #{tpu_custom_call.1} parent=1 // pred_check_branch
      %32 = sbr.rel (0) target = $region13
    $region12: #{tpu_custom_call.1} parent=1 // pred_region
      %s34 = ssub.s32 256, 256
      %35 = vsyncadd [#allocation6], %s34
      %s37 = sshll.u32 [#allocation7], 4
      %s38 = int_to_ptr.vmem [resolvable:$true] %s37
      %40 = dma.hbm_to_vmem [thread:$0]  %s2, 256, %s38, [#allocation6]
    $region13: #{tpu_custom_call.1} parent=1 // pred_fallthru
      _
    // Predicated region
    $region14: #{tpu_custom_call.1} parent=1 // pred_check
      _
    $region15: #{tpu_custom_call.1} parent=1 // pred_check_branch
      %42 = sbr.rel (0) target = $region17
    $region16: #{tpu_custom_call.1} parent=1 // pred_region
      %43 = dma.done [#allocation3], 256
    $region17: #{tpu_custom_call.1} parent=1 // pred_fallthru
      _
    // Predicated region
    $region18: #{tpu_custom_call.1} parent=1 // pred_check
      _
    $region19: #{tpu_custom_call.1} parent=1 // pred_check_branch
      %45 = sbr.rel (0) target = $region21
    $region20: #{tpu_custom_call.1} parent=1 // pred_region
      %46 = dma.done [#allocation6], 256
    $region21: #{tpu_custom_call.1} parent=1 // pred_fallthru
      _
    // Predicated region
    $region22: #{tpu_custom_call.1} parent=1 // pred_check
      _
    $region23: #{tpu_custom_call.1} parent=1 // pred_check_branch
      %48 = sbr.rel (0) target = $region25
    $region24: #{tpu_custom_call.1} parent=1 // pred_region
      %49 = dma.done [#allocation6], 256
    $region25: #{tpu_custom_call.1} parent=1 // pred_fallthru
      _
    %v50 = vld [vmem:[#allocation2] sm:$0xff]
    %v51 = vld [vmem:[#allocation2 + $0x8] sm:$0xff]
    %v52 = vld [vmem:[#allocation5] sm:$0xff]
    %v53 = vld [vmem:[#allocation5 + $0x8] sm:$0xff]
    %v54 = vadd.f32 %v50, %v52
    %v55 = vadd.f32 %v51, %v53
    %v56 = vld [vmem:[#allocation7] sm:$0xff]
    %v57 = vld [vmem:[#allocation7 + $0x8] sm:$0xff]
    %v58 = vadd.f32 %v54, %v56
    %v59 = vadd.f32 %v55, %v57
    %60 = vst [vmem:[#allocation8] sm:$0xff] %v58
    %61 = vst [vmem:[#allocation8 + $0x8] sm:$0xff] %v59
    // Predicated region
    $region26: #{tpu_custom_call.1} parent=1 // pred_check
      _
    $region27: #{tpu_custom_call.1} parent=1 // pred_check_branch
      %63 = sbr.rel (0) target = $region29
    $region28: #{tpu_custom_call.1} parent=1 // pred_region
      %s65 = ssub.s32 256, 256
      %66 = vsyncadd [#allocation4], %s65
      %s68 = sshll.u32 [#allocation8], 4
      %s69 = int_to_ptr.vmem [resolvable:$true] %s68
      %71 = dma.vmem_to_hbm [thread:$0]  %s69, 256, %s3, [#allocation4]
    $region29: #{tpu_custom_call.1} parent=1 // pred_fallthru
      _
    // Predicated region
    $region30: #{tpu_custom_call.1} parent=1 // pred_check
      _
    $region31: #{tpu_custom_call.1} parent=1 // pred_check_branch
      %73 = sbr.rel (0) target = $region33
    $region32: #{tpu_custom_call.1} parent=1 // pred_region
      %74 = dma.done [#allocation4], 256
    $region33: #{tpu_custom_call.1} parent=1 // pred_fallthru
      _
    %75 = vsyncpa [#allocation3], 1
    %76 = vsyncpa [#allocation6], 1
    %77 = vsyncpa [#allocation4], 1

</llo_original>
